<compile_context>
chip_gen: v6e
topology: v6e:2x2x1
jax: 0.10.0
libtpu: 0.0.40
codegen_flags: <defaults>
</compile_context>

<pallas_src>
import functools

import jax
import jax.numpy as jnp
from jax import lax
from jax.experimental import pallas as pl
from jax.experimental.pallas import tpu as pltpu


# ---------------------------------------------------------------------------
# Kernel body
# ---------------------------------------------------------------------------
def _mlp_kernel(x_ref, w_in_ref, b_in_ref, w_out_ref, b_out_ref, o_ref, acc_ref,
                *, act_type, gelu_variant):
    # x_ref:     (tm, d_model)   compute dtype (bf16 by default)
    # w_in_ref:  (tn, d_model)   slice of W_in  (original (d_mlp, d_model) layout)
    # b_in_ref:  (1, tn)         f32
    # w_out_ref: (d_model, tn)   slice of W_out (original (d_model, d_mlp) layout)
    # b_out_ref: (1, d_model)    f32
    # o_ref:     (tm, d_model)   output dtype
    # acc_ref:   (tm, d_model)   f32 accumulator, resident across the d_mlp grid axis
    j = pl.program_id(1)

    @pl.when(j == 0)
    def _():
        acc_ref[...] = jnp.zeros_like(acc_ref)

    # pre = x @ W_in_slice.T + b_in_slice   (f32 MXU accumulation).
    # Contraction is on both operands' minor dim ((M,K) x (N,K)); no XLU
    # transpose is needed and the weights stay in their original HBM layout.
    pre = lax.dot_general(
        x_ref[...], w_in_ref[...],
        dimension_numbers=(((1,), (1,)), ((), ())),
        preferred_element_type=jnp.float32,
    ) + b_in_ref[...]

    if act_type == "ReLU":
        act = jnp.maximum(pre, 0.0)
    else:  # GeLU
        if gelu_variant == "sigmoid":
            # x * sigmoid(1.702 x)  (sigmoid via tanh -> EUP slot).
            # ~4 VALU + 1 EUP op / elem; max abs dev ~2e-2 vs exact erf GeLU.
            act = pre * (0.5 * (1.0 + jnp.tanh(jnp.float32(0.851) * pre)))
        else:
            # tanh-approx GeLU: transcendental lands on the EUP slot instead of
            # the VALU-heavy erf polynomial (~1e-3 max abs dev from exact GeLU).
            c = jnp.float32(0.7978845608028654)  # sqrt(2/pi)
            act = 0.5 * pre * (1.0 + jnp.tanh(c * (pre + 0.044715 * (pre * pre * pre))))

    # partial_out = act @ W_out_slice.T, accumulated over d_mlp chunks.
    acc_ref[...] += lax.dot_general(
        act.astype(w_out_ref.dtype), w_out_ref[...],
        dimension_numbers=(((1,), (1,)), ((), ())),
        preferred_element_type=jnp.float32,
    )

    @pl.when(j == pl.num_programs(1) - 1)
    def _():
        o_ref[...] = (acc_ref[...] + b_out_ref[...]).astype(o_ref.dtype)


# ---------------------------------------------------------------------------
# Tiling / hardware helpers
# ---------------------------------------------------------------------------
def _round_up(x, m):
    return ((x + m - 1) // m) * m


def _device_gen():
    try:
        kind = jax.devices()[0].device_kind.lower()
    except Exception:
        return "v6"
    for g in ("v7", "v6", "v5"):
        if g in kind:
            return g
    return "v6"


def _vmem_capacity_bytes(gen):
    try:
        return int(pltpu.get_tpu_info().vmem_capacity_bytes)
    except Exception:
        # v7x has 64 MiB per TC; v5e/v6e have 128 MiB.
        return (64 if gen == "v7" else 128) * 1024 * 1024


# Row-tile targets: weight re-streaming per row block means arithmetic
# intensity per weight byte ~ tm FLOPs/byte; HBM-roofline crossover is
# ~240 rows (v5e), ~700 (v6e), ~320 per TC (v7x).
_TM_TARGET = {"v5": 512, "v6": 1024, "v7": 512}
# d_mlp chunk targets: fatter chunks amortize the fixed ~0.35us/step overhead
# and the f32 accumulator read-modify-write; kept smaller on v7x (64 MiB VMEM).
_TN_TARGET = {"v5": 1024, "v6": 1024, "v7": 512}


def _pick_chunk(total, preferred, align):
    """Largest multiple of `align` <= preferred that divides `total`, else `total`."""
    t = min(preferred, total)
    t = (t // align) * align
    while t >= align:
        if total % t == 0:
            return t
        t -= align
    return total


def _vmem_usage_bytes(tm, tn, d_model, in_isz, out_isz):
    """Rough live-VMEM model for the chosen tiles (double-buffered pipeline)."""
    x_b = 2 * tm * d_model * in_isz                 # x row block (2 buffers)
    w_b = 2 * 2 * tn * d_model * in_isz             # W_in + W_out chunks (2 buffers each)
    out_b = 2 * tm * d_model * out_isz              # output block (2 buffers)
    acc_b = tm * d_model * 4                        # f32 accumulator scratch
    tmp_b = 3 * tm * tn * 4                         # pre/act f32 temporaries + headroom
    bias_b = 4 * (tn + d_model) * 4
    return x_b + w_b + out_b + acc_b + tmp_b + bias_b


def prepare_mlp_params(w_in, b_in, w_out, b_out, compute_dtype=jnp.bfloat16):
    """One-time parameter prep (do at load time, not per call): cast weights to
    the MXU compute dtype and reshape biases to (1, N) f32.  Keeps the per-call
    hot path from re-writing 2*d_mlp*d_model weight bytes of HBM every step."""
    return (w_in.astype(compute_dtype),
            jnp.asarray(b_in, jnp.float32).reshape(1, -1),
            w_out.astype(compute_dtype),
            jnp.asarray(b_out, jnp.float32).reshape(1, -1))


# ---------------------------------------------------------------------------
# Wrapper
# ---------------------------------------------------------------------------
def mlp_forward(x, w_in, b_in, w_out, b_out, act_type="GeLU", *,
                tm=None, tn=None, compute_dtype=jnp.bfloat16,
                gelu_variant="tanh"):
    """x: (B, P, d_model). W_in: (d_mlp, d_model), W_out: (d_model, d_mlp).

    Returns (B, P, d_model) in x.dtype.  Weights may be passed pre-cast to
    `compute_dtype` (see prepare_mlp_params) to avoid per-call casts.
    """
    if act_type not in ("ReLU", "GeLU"):
        raise ValueError(f"Invalid act_type {act_type}")
    B, P, d_model = x.shape
    d_mlp = w_in.shape[0]
    rows = B * P

    gen = _device_gen()
    cap = _vmem_capacity_bytes(gen)
    # Generation-aware scoped-VMEM limit: ~112 MiB on 128 MiB parts (v5e/v6e),
    # ~48 MiB on v7x's 64 MiB part.
    vmem_limit = min(cap - 16 * 1024 * 1024, 112 * 1024 * 1024)
    budget = int(vmem_limit * 0.8)   # leave compiler scratch headroom

    in_isz = jnp.dtype(compute_dtype).itemsize
    out_isz = jnp.dtype(x.dtype).itemsize

    # d_mlp chunk: lane-aligned divisor of d_mlp.
    if tn is None:
        tn = _TN_TARGET[gen]
    tn = _pick_chunk(d_mlp, tn, 128)

    # Row tile: 16-aligned (bf16 sublane packing), capped by the (padded) row count.
    if tm is None:
        tm = _TM_TARGET[gen]
    tm = max(16, min(_round_up(tm, 16), _round_up(rows, 16)))
    # v7x: keep the "parallel" row axis splittable across its 2 TensorCores.
    if gen == "v7" and rows >= 512:
        tm = min(tm, _round_up(-(-rows // 2), 16))
    # Fit the VMEM budget: shrink tm first (steps of 128), then tn.
    while _vmem_usage_bytes(tm, tn, d_model, in_isz, out_isz) > budget and tm > 128:
        tm = max(128, tm - 128)
    while _vmem_usage_bytes(tm, tn, d_model, in_isz, out_isz) > budget and tn > 256:
        tn = _pick_chunk(d_mlp, max(256, tn // 2), 128)

    rows_p = _round_up(rows, tm)
    x2d = x.reshape(rows, d_model)
    if rows_p != rows:
        # Only pads when the row count isn't already a tile multiple.
        x2d = jnp.pad(x2d, ((0, rows_p - rows), (0, 0)))

    # Hoisted casts: no-ops when params were prepared once via prepare_mlp_params.
    x2d = x2d if x2d.dtype == compute_dtype else x2d.astype(compute_dtype)
    w_in_c = w_in if w_in.dtype == compute_dtype else w_in.astype(compute_dtype)
    w_out_c = w_out if w_out.dtype == compute_dtype else w_out.astype(compute_dtype)
    b_in_2d = jnp.asarray(b_in, jnp.float32).reshape(1, d_mlp)
    b_out_2d = jnp.asarray(b_out, jnp.float32).reshape(1, d_model)

    n_row = rows_p // tm
    n_chunk = d_mlp // tn

    # Advisory cost estimate for XLA scheduling around the custom call.
    flops = 4 * rows_p * d_model * d_mlp
    transcendentals = rows_p * d_mlp if act_type == "GeLU" else 0
    bytes_accessed = (
        rows_p * d_model * in_isz                                    # x in
        + rows_p * d_model * out_isz                                 # out
        + n_row * (w_in_c.size + w_out_c.size) * in_isz              # weights re-read per row block
        + (b_in_2d.size + b_out_2d.size) * 4                         # biases
    )

    kernel = functools.partial(_mlp_kernel, act_type=act_type, gelu_variant=gelu_variant)

    out2d = pl.pallas_call(
        kernel,
        out_shape=jax.ShapeDtypeStruct((rows_p, d_model), x.dtype),
        grid_spec=pltpu.PrefetchScalarGridSpec(
            num_scalar_prefetch=0,
            grid=(n_row, n_chunk),
            in_specs=[
                pl.BlockSpec((tm, d_model), lambda i, j: (i, 0)),      # x row block
                pl.BlockSpec((tn, d_model), lambda i, j: (j, 0)),      # W_in chunk
                pl.BlockSpec((1, tn), lambda i, j: (0, j)),            # b_in chunk
                pl.BlockSpec((d_model, tn), lambda i, j: (0, j)),      # W_out chunk
                pl.BlockSpec((1, d_model), lambda i, j: (0, 0)),       # b_out (grid-invariant)
            ],
            out_specs=pl.BlockSpec((tm, d_model), lambda i, j: (i, 0)),
            scratch_shapes=[pltpu.VMEM((tm, d_model), jnp.float32)],   # f32 output accumulator
        ),
        compiler_params=pltpu.CompilerParams(
            dimension_semantics=("parallel", "arbitrary"),
            vmem_limit_bytes=vmem_limit,
        ),
        cost_estimate=pl.CostEstimate(
            flops=flops, transcendentals=transcendentals, bytes_accessed=bytes_accessed),
    )(x2d, w_in_c, b_in_2d, w_out_c, b_out_2d)

    return out2d[:rows].reshape(B, P, d_model)


# ---------------------------------------------------------------------------
# Pure-JAX reference (PyTorch semantics; F.gelu default == exact erf GeLU)
# ---------------------------------------------------------------------------
def mlp_reference(x, w_in, b_in, w_out, b_out, act_type="GeLU", gelu_variant="erf"):
    pre = jnp.einsum("md,bpd->bpm", w_in, x) + b_in.reshape(-1)
    if act_type == "ReLU":
        act = jnp.maximum(pre, 0.0)
    elif gelu_variant == "tanh":
        c = 0.7978845608028654
        act = 0.5 * pre * (1.0 + jnp.tanh(c * (pre + 0.044715 * pre ** 3)))
    elif gelu_variant == "sigmoid":
        act = pre * (0.5 * (1.0 + jnp.tanh(0.851 * pre)))
    else:
        act = 0.5 * pre * (1.0 + lax.erf(pre / jnp.sqrt(2.0)))
    return jnp.einsum("dm,bpm->bpd", w_out, act) + b_out.reshape(-1)


if __name__ == "__main__":
    # Small transformer-ish shapes: batch=2, pos=256, d_model=128, d_mlp=1024.
    B, P, d_model, d_mlp = 2, 256, 128, 1024

    key = jax.random.PRNGKey(0)
    kx, kwin, kwout, kbin, kbout = jax.random.split(key, 5)

    x = jax.random.normal(kx, (B, P, d_model), dtype=jnp.float32)
    w_in = jax.random.normal(kwin, (d_mlp, d_model), dtype=jnp.float32) / jnp.sqrt(d_model)
    b_in = 0.1 * jax.random.normal(kbin, (d_mlp,), dtype=jnp.float32)
    w_out = jax.random.normal(kwout, (d_model, d_mlp), dtype=jnp.float32) / jnp.sqrt(d_model)
    b_out = 0.1 * jax.random.normal(kbout, (d_model,), dtype=jnp.float32)

    # 1) Tight structural check: f32 operands, forced small tiles so the grid is
    #    (4 row blocks x 4 d_mlp chunks), vs a same-math (tanh-GeLU) reference.
    out_f32 = mlp_forward(x, w_in, b_in, w_out, b_out, act_type="GeLU",
                          compute_dtype=jnp.float32, tm=128, tn=256)
    out_f32 = jax.block_until_ready(out_f32)
    ref_tanh = mlp_reference(x, w_in, b_in, w_out, b_out, act_type="GeLU",
                             gelu_variant="tanh")
    assert out_f32.shape == (B, P, d_model)
    assert jnp.allclose(out_f32, ref_tanh, atol=2e-3, rtol=2e-3), "f32 mismatch vs reference"

    # 2) Default fast path: generation-aware tm/tn, bf16 MXU operands (f32 acc),
    #    weights pre-cast ONCE (hoisted out of the hot path), checked against the
    #    exact-erf PyTorch semantics with a bf16-appropriate tolerance.
    w_in_c, b_in_c, w_out_c, b_out_c = prepare_mlp_params(w_in, b_in, w_out, b_out)
    out = mlp_forward(x, w_in_c, b_in_c, w_out_c, b_out_c, act_type="GeLU")
    out = jax.block_until_ready(out)
    ref = mlp_reference(x, w_in, b_in, w_out, b_out, act_type="GeLU")
    assert out.shape == (B, P, d_model)
    assert jnp.allclose(out, ref, atol=1e-1, rtol=2e-2), "bf16 mismatch vs reference"

    # 3) ReLU path sanity (f32, default tiles).
    out_relu = mlp_forward(x, w_in, b_in, w_out, b_out, act_type="ReLU",
                           compute_dtype=jnp.float32)
    out_relu = jax.block_until_ready(out_relu)
    ref_relu = mlp_reference(x, w_in, b_in, w_out, b_out, act_type="ReLU")
    assert jnp.allclose(out_relu, ref_relu, atol=2e-3, rtol=2e-3), "ReLU mismatch vs reference"

    print("KERNEL_OK")
</pallas_src>

<mosaic_0001>
module attributes {stable_mosaic.version = 11 : i64} {
  func.func @_mlp_kernel(%arg0: i32, %arg1: i32, %arg2: memref<128x128xf32, #tpu.memory_space<vmem>>, %arg3: memref<256x128xf32, #tpu.memory_space<vmem>>, %arg4: memref<1x256xf32, #tpu.memory_space<vmem>>, %arg5: memref<128x256xf32, #tpu.memory_space<vmem>>, %arg6: memref<1x128xf32, #tpu.memory_space<vmem>>, %arg7: memref<128x128xf32, #tpu.memory_space<vmem>>, %arg8: memref<128x128xf32, #tpu.memory_space<vmem>>) attributes {dimension_semantics = [#tpu.dimension_semantics<parallel>, #tpu.dimension_semantics<arbitrary>], iteration_bounds = array<i64: 4, 4>, scalar_prefetch = 0 : i64, scratch_operands = 1 : i64, tpu.core_type = #tpu.core_type<tc>, window_params = [{transform_indices = @transform_0, window_bounds = array<i64: 128, 128>}, {transform_indices = @transform_1, window_bounds = array<i64: 256, 128>}, {transform_indices = @transform_2, window_bounds = array<i64: 1, 256>}, {transform_indices = @transform_3, window_bounds = array<i64: 128, 256>}, {pipeline_mode = #tpu.pipeline_mode<synchronous>, transform_indices = @transform_4, window_bounds = array<i64: 1, 128>}, {transform_indices = @transform_5, window_bounds = array<i64: 128, 128>}]} {
    %c0_i32 = arith.constant 0 : i32
    %0 = arith.cmpi eq, %arg1, %c0_i32 : i32
    %1 = arith.extui %0 : i1 to i32
    %c0_i32_0 = arith.constant 0 : i32
    %2 = arith.cmpi ne, %1, %c0_i32_0 : i32
    scf.if %2 {
      %cst_18 = arith.constant 0.000000e+00 : f32
      %30 = vector.broadcast %cst_18 : f32 to vector<128x128xf32>
      %c0_19 = arith.constant 0 : index
      %c0_20 = arith.constant 0 : index
      %31 = vector.load %arg8[%c0_19, %c0_20] : memref<128x128xf32, #tpu.memory_space<vmem>>, vector<128x128xf32>
      tpu.vector_store %arg8[%c0_19, %c0_20], %30 {strides = array<i32>} : memref<128x128xf32, #tpu.memory_space<vmem>>, vector<128x128xf32>,
    } else {
    }
    %c0 = arith.constant 0 : index
    %c0_1 = arith.constant 0 : index
    %3 = vector.load %arg2[%c0, %c0_1] : memref<128x128xf32, #tpu.memory_space<vmem>>, vector<128x128xf32>
    %c0_2 = arith.constant 0 : index
    %c0_3 = arith.constant 0 : index
    %4 = vector.load %arg3[%c0_2, %c0_3] : memref<256x128xf32, #tpu.memory_space<vmem>>, vector<256x128xf32>
    %cst = arith.constant dense<0.000000e+00> : vector<128x256xf32>
    %5 = tpu.matmul %3, %4, %cst {dimension_numbers = #tpu.dot_dimension_numbers<[1], [1], [0], [0], [0, 0, 1, 0], [], []>} : vector<128x128xf32>, vector<256x128xf32>, vector<128x256xf32> -> vector<128x256xf32>
    %c0_4 = arith.constant 0 : index
    %c0_5 = arith.constant 0 : index
    %6 = vector.load %arg4[%c0_4, %c0_5] : memref<1x256xf32, #tpu.memory_space<vmem>>, vector<1x256xf32>
    %7 = vector.broadcast %6 : vector<1x256xf32> to vector<128x256xf32>
    %8 = arith.addf %5, %7 : vector<128x256xf32>
    %cst_6 = arith.constant 5.000000e-01 : f32
    %9 = vector.broadcast %cst_6 : f32 to vector<128x256xf32>
    %10 = arith.mulf %9, %8 : vector<128x256xf32>
    %11 = arith.mulf %8, %8 : vector<128x256xf32>
    %12 = arith.mulf %11, %8 : vector<128x256xf32>
    %cst_7 = arith.constant 4.471500e-02 : f32
    %13 = vector.broadcast %cst_7 : f32 to vector<128x256xf32>
    %14 = arith.mulf %13, %12 : vector<128x256xf32>
    %15 = arith.addf %8, %14 : vector<128x256xf32>
    %cst_8 = arith.constant 0.797884583 : f32
    %16 = vector.broadcast %cst_8 : f32 to vector<128x256xf32>
    %17 = arith.mulf %16, %15 : vector<128x256xf32>
    %18 = math.tanh %17 : vector<128x256xf32>
    %cst_9 = arith.constant 1.000000e+00 : f32
    %19 = vector.broadcast %cst_9 : f32 to vector<128x256xf32>
    %20 = arith.addf %19, %18 : vector<128x256xf32>
    %21 = arith.mulf %10, %20 : vector<128x256xf32>
    %c0_10 = arith.constant 0 : index
    %c0_11 = arith.constant 0 : index
    %22 = vector.load %arg8[%c0_10, %c0_11] : memref<128x128xf32, #tpu.memory_space<vmem>>, vector<128x128xf32>
    %c0_12 = arith.constant 0 : index
    %c0_13 = arith.constant 0 : index
    %23 = vector.load %arg5[%c0_12, %c0_13] : memref<128x256xf32, #tpu.memory_space<vmem>>, vector<128x256xf32>
    %cst_14 = arith.constant dense<0.000000e+00> : vector<128x128xf32>
    %24 = tpu.matmul %21, %23, %cst_14 {dimension_numbers = #tpu.dot_dimension_numbers<[1], [1], [0], [0], [0, 0, 1, 0], [], []>} : vector<128x256xf32>, vector<128x256xf32>, vector<128x128xf32> -> vector<128x128xf32>
    %25 = arith.addf %22, %24 : vector<128x128xf32>
    %c0_15 = arith.constant 0 : index
    %c0_16 = arith.constant 0 : index
    %26 = vector.load %arg8[%c0_15, %c0_16] : memref<128x128xf32, #tpu.memory_space<vmem>>, vector<128x128xf32>
    tpu.vector_store %arg8[%c0_15, %c0_16], %25 {strides = array<i32>} : memref<128x128xf32, #tpu.memory_space<vmem>>, vector<128x128xf32>,
    %c3_i32 = arith.constant 3 : i32
    %27 = arith.cmpi eq, %arg1, %c3_i32 : i32
    %28 = arith.extui %27 : i1 to i32
    %c0_i32_17 = arith.constant 0 : i32
    %29 = arith.cmpi ne, %28, %c0_i32_17 : i32
    scf.if %29 {
      %c0_18 = arith.constant 0 : index
      %c0_19 = arith.constant 0 : index
      %30 = vector.load %arg8[%c0_18, %c0_19] : memref<128x128xf32, #tpu.memory_space<vmem>>, vector<128x128xf32>
      %c0_20 = arith.constant 0 : index
      %c0_21 = arith.constant 0 : index
      %31 = vector.load %arg6[%c0_20, %c0_21] : memref<1x128xf32, #tpu.memory_space<vmem>>, vector<1x128xf32>
      %32 = vector.broadcast %31 : vector<1x128xf32> to vector<128x128xf32>
      %33 = arith.addf %30, %32 : vector<128x128xf32>
      %c0_22 = arith.constant 0 : index
      %c0_23 = arith.constant 0 : index
      %34 = vector.load %arg7[%c0_22, %c0_23] : memref<128x128xf32, #tpu.memory_space<vmem>>, vector<128x128xf32>
      tpu.vector_store %arg7[%c0_22, %c0_23], %33 {strides = array<i32>} : memref<128x128xf32, #tpu.memory_space<vmem>>, vector<128x128xf32>,
    } else {
    }
    return
  }
  func.func @transform_0(%arg0: i32, %arg1: i32) -> (i32, i32) {
    %c0_i32 = arith.constant 0 : i32
    %c0_i32_0 = arith.constant 0 : i32
    return %arg0, %c0_i32 : i32, i32
  }
  func.func @transform_1(%arg0: i32, %arg1: i32) -> (i32, i32) {
    %c0_i32 = arith.constant 0 : i32
    %c0_i32_0 = arith.constant 0 : i32
    return %arg1, %c0_i32 : i32, i32
  }
  func.func @transform_2(%arg0: i32, %arg1: i32) -> (i32, i32) {
    %c0_i32 = arith.constant 0 : i32
    %c0_i32_0 = arith.constant 0 : i32
    return %c0_i32, %arg1 : i32, i32
  }
  func.func @transform_3(%arg0: i32, %arg1: i32) -> (i32, i32) {
    %c0_i32 = arith.constant 0 : i32
    %c0_i32_0 = arith.constant 0 : i32
    return %c0_i32, %arg1 : i32, i32
  }
  func.func @transform_4(%arg0: i32, %arg1: i32) -> (i32, i32) {
    %c0_i32 = arith.constant 0 : i32
    %c0_i32_0 = arith.constant 0 : i32
    %c0_i32_1 = arith.constant 0 : i32
    return %c0_i32, %c0_i32_0 : i32, i32
  }
  func.func @transform_5(%arg0: i32, %arg1: i32) -> (i32, i32) {
    %c0_i32 = arith.constant 0 : i32
    %c0_i32_0 = arith.constant 0 : i32
    return %arg0, %c0_i32 : i32, i32
  }
}

</mosaic_0001>

<llo_original>
// kernel: tpu_custom_call.1
$region0: #{tpu_custom_call.1}
  #allocation0 [shape = 'u32[]', space=smem, size = 0x4, offset = 0x4, fixed_abs, tag = 'smem constant byte address 0x4 - core index']
  #allocation1 [shape = 'u32[144,128]{1,0:T(1,128)}', space=vmem, size = 0x12000, scoped, tag = 'internal scratch']
  #allocation2 [shape = 'f32[128,128]{1,0:T(8,128)}', space=vmem, size = 0x10000, scoped, tag = 'scratch operand']
  %s0 = inlined_call_operand.hbm [shape: f32[512,128], index: 0, kind: input, shape index: {}]
  %s1 = inlined_call_operand.hbm [shape: f32[1024,128], index: 1, kind: input, shape index: {}]
  %s2 = inlined_call_operand.hbm [shape: f32[1,1024], index: 2, kind: input, shape index: {}]
  %s3 = inlined_call_operand.hbm [shape: f32[128,1024], index: 3, kind: input, shape index: {}]
  %s4 = inlined_call_operand.vmem [shape: f32[1,128], index: 4, kind: input, shape index: {}]
  %s5 = inlined_call_operand.hbm [shape: f32[512,128], index: 5, kind: output, shape index: {}]
  %s6 = sld [smem:[#allocation0]]
  $region77: #{tpu_custom_call.1} parent=0
    _
  %s8 = ssub.s32 1, %s6
  %s9 = scalar_select 0, %s8, %s6
  $region1: #{tpu_custom_call.1} parent=0
    #allocation3 [shape = 'u8[131072]{0}', space=vmem, size = 0x20000, scoped, tag = 'input window, operand 0']
    #allocation4 [shape = 's32[2]{0}', space=sflag, size = 0x8, scoped, tag = 'scoped memory for tpu_custom_call.1']
    #allocation5 [shape = 's32[2]{0}', space=sflag, size = 0x8, scoped, tag = 'scoped memory for tpu_custom_call.1']
    #allocation6 [shape = 'u8[262144]{0}', space=vmem, size = 0x40000, scoped, tag = 'input window, operand 1']
    #allocation7 [shape = 's32[2]{0}', space=sflag, size = 0x8, scoped, tag = 'scoped memory for tpu_custom_call.1']
    #allocation8 [shape = 'u8[2048]{0}', space=vmem, size = 0x800, scoped, tag = 'input window, operand 2']
    #allocation9 [shape = 'u8[262144]{0}', space=vmem, size = 0x40000, scoped, tag = 'input window, operand 3']
    #allocation10 [shape = 's32[2]{0}', space=sflag, size = 0x8, scoped, tag = 'scoped memory for tpu_custom_call.1']
    #allocation11 [shape = 'u8[131072]{0}', space=vmem, size = 0x20000, scoped, tag = 'output window, operand 0']
    %10 = vsyncpa [#allocation4], 0
    %s11 = scalar_lea.sflag [#allocation4], 1
    %12 = vsyncpa %s11, 0
    %13 = vsyncpa [#allocation7], 0
    %s14 = scalar_lea.sflag [#allocation7], 1
    %15 = vsyncpa %s14, 0
    %16 = vsyncpa [#allocation10], 0
    %s17 = scalar_lea.sflag [#allocation10], 1
    %18 = vsyncpa %s17, 0
    %19 = vsyncpa [#allocation5], 0
    %s20 = scalar_lea.sflag [#allocation5], 1
    %21 = vsyncpa %s20, 0
    loop: start=0, step=1, limit=18
    $region2: #{tpu_custom_call.1} parent=1 // loop_pre_header
      _
    $region3: #{tpu_custom_call.1} parent=1 // loop_header
      %s23 = sphi 0, %s27
      %p24 = scmp.ge.s32.totalorder %s23, 18
      %s30 = sphi 0, %s42
      %s31 = sphi 0, %s38
      %s32 = sphi 0, %s30
      %s33 = sphi 0, %s31
      %s34 = sphi 0, %s32
      %s35 = sphi 0, %s33
      %s45 = sphi 0, %s47
      %s48 = sphi 0, %s45
      %s49 = sphi 0, %s48
      %s65 = sphi 0, %s49
      %s71 = sphi 0, %s73
      %s74 = sphi 0, %s71
      %s75 = sphi 0, %s74
      %s91 = sphi 0, %s75
      %s97 = sphi 0, %s99
      %s100 = sphi 0, %s97
      %s101 = sphi 0, %s100
      %s117 = sphi 0, %s101
      %s123 = sphi 0, %s125
      %s126 = sphi 0, %s123
      %s127 = sphi 0, %s126
      %s143 = sphi 0, %s127
      %s147 = sphi 0, %s147
      %s149 = sphi 0, %s147
      %s150 = sphi 0, %s149
      %s164 = sphi 0, %s150
      %s170 = sphi 0, %s172
      %s173 = sphi 0, %s170
      %s174 = sphi 0, %s173
      %s190 = sphi 0, %s174
    $region4: #{tpu_custom_call.1} parent=1 // loop_header_branch
      %26 = sbr.rel (%p24) target = $region8
    $region5: #{tpu_custom_call.1} parent=1 // loop_body
      %s28 = ssub.s32 %s23, 1
      %s29 = ssub.s32 %s23, 2
      %s36 = sadd.s32 1, %s31
      %p37 = scmp.ge.s32.totalorder %s36, 4
      %s38 = scalar_select %p37, 0, %s36
      %s39 = sadd.s32 1, %s30
      %s40 = scalar_select %p37, %s39, %s30
      %p41 = scmp.ge.s32.totalorder %s40, 4
      %s42 = scalar_select %p41, 0, %s40
      %s43 = ssub.s32 %s30, %s42
      %p44 = scmp.eq.s32.totalorder %s43, 0
      %s46 = sadd.s32 %s45, 1
      %s47 = scalar_select %p44, %s45, %s46
      %p50 = pneg %p44
      %p51 = scmp.eq.s32.totalorder %s23, 15
      %p52 = por %p50, %p51
      %p53 = scmp.ne.s32.totalorder %s45, %s48
      %p54 = scmp.eq.s32.totalorder %s23, 0
      %p55 = por %p53, %p54
      %p56 = scmp.ne.s32.totalorder %s45, %s48
      %p57 = scmp.eq.s32.totalorder %s28, 15
      %p58 = por %p56, %p57
      %p59 = scmp.ne.s32.totalorder %s48, %s49
      %p60 = scmp.eq.s32.totalorder %s28, 0
      %p61 = por %p59, %p60
      %p62 = scmp.ne.s32.totalorder %s48, %s49
      %p63 = scmp.eq.s32.totalorder %s29, 15
      %p64 = por %p62, %p63
      %p66 = scmp.ne.s32.totalorder %s49, %s65
      %p67 = scmp.eq.s32.totalorder %s29, 0
      %p68 = por %p66, %p67
      %s69 = ssub.s32 %s31, %s38
      %p70 = scmp.eq.s32.totalorder %s69, 0
      %s72 = sadd.s32 %s71, 1
      %s73 = scalar_select %p70, %s71, %s72
      %p76 = pneg %p70
      %p77 = scmp.eq.s32.totalorder %s23, 15
      %p78 = por %p76, %p77
      %p79 = scmp.ne.s32.totalorder %s71, %s74
      %p80 = scmp.eq.s32.totalorder %s23, 0
      %p81 = por %p79, %p80
      %p82 = scmp.ne.s32.totalorder %s71, %s74
      %p83 = scmp.eq.s32.totalorder %s28, 15
      %p84 = por %p82, %p83
      %p85 = scmp.ne.s32.totalorder %s74, %s75
      %p86 = scmp.eq.s32.totalorder %s28, 0
      %p87 = por %p85, %p86
      %p88 = scmp.ne.s32.totalorder %s74, %s75
      %p89 = scmp.eq.s32.totalorder %s29, 15
      %p90 = por %p88, %p89
      %p92 = scmp.ne.s32.totalorder %s75, %s91
      %p93 = scmp.eq.s32.totalorder %s29, 0
      %p94 = por %p92, %p93
      %s95 = ssub.s32 %s31, %s38
      %p96 = scmp.eq.s32.totalorder %s95, 0
      %s98 = sadd.s32 %s97, 1
      %s99 = scalar_select %p96, %s97, %s98
      %p102 = pneg %p96
      %p103 = scmp.eq.s32.totalorder %s23, 15
      %p104 = por %p102, %p103
      %p105 = scmp.ne.s32.totalorder %s97, %s100
      %p106 = scmp.eq.s32.totalorder %s23, 0
      %p107 = por %p105, %p106
      %p108 = scmp.ne.s32.totalorder %s97, %s100
      %p109 = scmp.eq.s32.totalorder %s28, 15
      %p110 = por %p108, %p109
      %p111 = scmp.ne.s32.totalorder %s100, %s101
      %p112 = scmp.eq.s32.totalorder %s28, 0
      %p113 = por %p111, %p112
      %p114 = scmp.ne.s32.totalorder %s100, %s101
      %p115 = scmp.eq.s32.totalorder %s29, 15
      %p116 = por %p114, %p115
      %p118 = scmp.ne.s32.totalorder %s101, %s117
      %p119 = scmp.eq.s32.totalorder %s29, 0
      %p120 = por %p118, %p119
      %s121 = ssub.s32 %s31, %s38
      %p122 = scmp.eq.s32.totalorder %s121, 0
      %s124 = sadd.s32 %s123, 1
      %s125 = scalar_select %p122, %s123, %s124
      %p128 = pneg %p122
      %p129 = scmp.eq.s32.totalorder %s23, 15
      %p130 = por %p128, %p129
      %p131 = scmp.ne.s32.totalorder %s123, %s126
      %p132 = scmp.eq.s32.totalorder %s23, 0
      %p133 = por %p131, %p132
      %p134 = scmp.ne.s32.totalorder %s123, %s126
      %p135 = scmp.eq.s32.totalorder %s28, 15
      %p136 = por %p134, %p135
      %p137 = scmp.ne.s32.totalorder %s126, %s127
      %p138 = scmp.eq.s32.totalorder %s28, 0
      %p139 = por %p137, %p138
      %p140 = scmp.ne.s32.totalorder %s126, %s127
      %p141 = scmp.eq.s32.totalorder %s29, 15
      %p142 = por %p140, %p141
      %p144 = scmp.ne.s32.totalorder %s127, %s143
      %p145 = scmp.eq.s32.totalorder %s29, 0
      %p146 = por %p144, %p145
      %s148 = sadd.s32 %s147, 1
      %p151 = scmp.eq.s32.totalorder %s23, 15
      %p152 = scmp.ne.s32.totalorder %s147, %s149
      %p153 = scmp.eq.s32.totalorder %s23, 0
      %p154 = por %p152, %p153
      %p155 = scmp.ne.s32.totalorder %s147, %s149
      %p156 = scmp.eq.s32.totalorder %s28, 15
      %p157 = por %p155, %p156
      %p158 = scmp.ne.s32.totalorder %s149, %s150
      %p159 = scmp.eq.s32.totalorder %s28, 0
      %p160 = por %p158, %p159
      %p161 = scmp.ne.s32.totalorder %s149, %s150
      %p162 = scmp.eq.s32.totalorder %s29, 15
      %p163 = por %p161, %p162
      %p165 = scmp.ne.s32.totalorder %s150, %s164
      %p166 = scmp.eq.s32.totalorder %s29, 0
      %p167 = por %p165, %p166
      %s168 = ssub.s32 %s30, %s42
      %p169 = scmp.eq.s32.totalorder %s168, 0
      %s171 = sadd.s32 %s170, 1
      %s172 = scalar_select %p169, %s170, %s171
      %p175 = pneg %p169
      %p176 = scmp.eq.s32.totalorder %s23, 15
      %p177 = por %p175, %p176
      %p178 = scmp.ne.s32.totalorder %s170, %s173
      %p179 = scmp.eq.s32.totalorder %s23, 0
      %p180 = por %p178, %p179
      %p181 = scmp.ne.s32.totalorder %s170, %s173
      %p182 = scmp.eq.s32.totalorder %s28, 15
      %p183 = por %p181, %p182
      %p184 = scmp.ne.s32.totalorder %s173, %s174
      %p185 = scmp.eq.s32.totalorder %s28, 0
      %p186 = por %p184, %p185
      %p187 = scmp.ne.s32.totalorder %s173, %s174
      %p188 = scmp.eq.s32.totalorder %s29, 15
      %p189 = por %p187, %p188
      %p191 = scmp.ne.s32.totalorder %s174, %s190
      %p192 = scmp.eq.s32.totalorder %s29, 0
      %p193 = por %p191, %p192
      %p194 = scmp.le.s32.totalorder 1, %s23
      %p195 = scmp.lt.s32.totalorder %s23, 17
      %p196 = pnand %p194, %p195
      %p197 = pneg %p196
      // Predicated region
      $region9: #{tpu_custom_call.1} parent=5 // pred_check
        _
      $region10: #{tpu_custom_call.1} parent=5 // pred_check_branch
        %199 = sbr.rel (%p196) target = $region12
      $region11: #{tpu_custom_call.1} parent=5 // pred_region
        %s200 = ssub.s32 %s23, 1
        // Predicated region
        $region13: #{tpu_custom_call.1} parent=11 // pred_check
          %p201 = pneg %p160
        $region14: #{tpu_custom_call.1} parent=11 // pred_check_branch
          %203 = sbr.rel (%p201) target = $region16
        $region15: #{tpu_custom_call.1} parent=11 // pred_region
          _
        $region16: #{tpu_custom_call.1} parent=11 // pred_fallthru
          _
      $region12: #{tpu_custom_call.1} parent=5 // pred_fallthru
        _
      %p204 = scmp.lt.s32.totalorder %s23, 16
      // Predicated region
      $region17: #{tpu_custom_call.1} parent=5 // pred_check
        %p205 = pneg %p204
      $region18: #{tpu_custom_call.1} parent=5 // pred_check_branch
        %207 = sbr.rel (%p205) target = $region20
      $region19: #{tpu_custom_call.1} parent=5 // pred_region
        // Predicated region
        $region21: #{tpu_custom_call.1} parent=19 // pred_check
          %p208 = pneg %p55
        $region22: #{tpu_custom_call.1} parent=19 // pred_check_branch
          %210 = sbr.rel (%p208) target = $region24
        $region23: #{tpu_custom_call.1} parent=19 // pred_region
          %s211 = sand.u32 %s45, 1
          %s212 = scalar_lea.sflag [#allocation4], %s211
          %s213 = sand.u32 %s45, 1
          %s214 = smul.addr %s213, 128
          %s215 = scalar_lea.vmem [#allocation3], %s214
          %s216 = smul.u32 16, %s30
          %s218 = ssub.s32 2048, 2048
          %219 = vsyncadd %s212, %s218
          %s220 = smul.addr %s216, 128
          %s221 = scalar_lea.hbm %s0, %s220
          %s222 = sshll.u32 %s215, 4
          %s223 = int_to_ptr.vmem [resolvable:$true] %s222
          %228 = dma.hbm_to_vmem [thread:$0]  %s221, 2048, %s223, %s212, 128, 128, 8
        $region24: #{tpu_custom_call.1} parent=19 // pred_fallthru
          _
        // Predicated region
        $region25: #{tpu_custom_call.1} parent=19 // pred_check
          %p229 = pneg %p81
        $region26: #{tpu_custom_call.1} parent=19 // pred_check_branch
          %231 = sbr.rel (%p229) target = $region28
        $region27: #{tpu_custom_call.1} parent=19 // pred_region
          %s232 = sand.u32 %s23, 1
          %s233 = scalar_lea.sflag [#allocation7], %s232
          %s234 = sand.u32 %s71, 1
          %s235 = smul.addr %s234, 256
          %s236 = scalar_lea.vmem [#allocation6], %s235
          %s237 = smul.u32 32, %s31
          %s239 = ssub.s32 4096, 4096
          %240 = vsyncadd %s233, %s239
          %s241 = smul.addr %s237, 128
          %s242 = scalar_lea.hbm %s1, %s241
          %s243 = sshll.u32 %s236, 4
          %s244 = int_to_ptr.vmem [resolvable:$true] %s243
          %249 = dma.hbm_to_vmem [thread:$0]  %s242, 4096, %s244, %s233, 128, 128, 8
        $region28: #{tpu_custom_call.1} parent=19 // pred_fallthru
          _
        // Predicated region
        $region29: #{tpu_custom_call.1} parent=19 // pred_check
          %p250 = pneg %p107
        $region30: #{tpu_custom_call.1} parent=19 // pred_check_branch
          %252 = sbr.rel (%p250) target = $region32
        $region31: #{tpu_custom_call.1} parent=19 // pred_region
          %s253 = sand.u32 %s23, 1
          %s254 = scalar_lea.sflag [#allocation7], %s253
          %s255 = sand.u32 %s97, 1
          %s256 = smul.addr %s255, 2
          %s257 = scalar_lea.vmem [#allocation8], %s256
          %s258 = smul.u32 2, %s31
          %s260 = ssub.s32 32, 32
          %261 = vsyncadd %s254, %s260
          %s262 = smul.addr %s258, 16
          %s263 = scalar_lea.hbm %s2, %s262
          %s265 = sshll.u32 %s257, 4
          %s266 = int_to_ptr.vmem [resolvable:$true] %s265
          %268 = dma.hbm_to_vmem [thread:$0]  %s263, 32, %s266, %s254
        $region32: #{tpu_custom_call.1} parent=19 // pred_fallthru
          _
        // Predicated region
        $region33: #{tpu_custom_call.1} parent=19 // pred_check
          %p269 = pneg %p133
        $region34: #{tpu_custom_call.1} parent=19 // pred_check_branch
          %271 = sbr.rel (%p269) target = $region36
        $region35: #{tpu_custom_call.1} parent=19 // pred_region
          %s272 = sand.u32 %s123, 1
          %s273 = scalar_lea.sflag [#allocation10], %s272
          %s274 = sand.u32 %s123, 1
          %s275 = smul.addr %s274, 256
          %s276 = scalar_lea.vmem [#allocation9], %s275
          %s277 = smul.u32 2, %s31
          %s279 = ssub.s32 4096, 4096
          %280 = vsyncadd %s273, %s279
          %s281 = smul.addr %s277, 128
          %s282 = scalar_lea.hbm %s3, %s281
          %s283 = sshll.u32 %s276, 4
          %s284 = int_to_ptr.vmem [resolvable:$true] %s283
          %289 = dma.hbm_to_vmem [thread:$0]  %s282, 4096, %s284, %s273, 1024, 256, 16
        $region36: #{tpu_custom_call.1} parent=19 // pred_fallthru
          _
      $region20: #{tpu_custom_call.1} parent=5 // pred_fallthru
        _
      %p290 = scmp.le.s32.totalorder 1, %s23
      %p291 = scmp.lt.s32.totalorder %s23, 17
      %p292 = pnand %p290, %p291
      %p293 = pneg %p292
      // Predicated region
      $region37: #{tpu_custom_call.1} parent=5 // pred_check
        _
      $region38: #{tpu_custom_call.1} parent=5 // pred_check_branch
        %295 = sbr.rel (%p292) target = $region40
      $region39: #{tpu_custom_call.1} parent=5 // pred_region
        %s296 = ssub.s32 %s23, 1
        %s297 = sand.u32 %s48, 1
        %s298 = scalar_lea.sflag [#allocation4], %s297
        %s299 = sand.u32 %s48, 1
        %s300 = smul.addr %s299, 128
        %s301 = scalar_lea.vmem [#allocation3], %s300
        // Predicated region
        $region41: #{tpu_custom_call.1} parent=39 // pred_check
          %p302 = pneg %p61
        $region42: #{tpu_custom_call.1} parent=39 // pred_check_branch
          %304 = sbr.rel (%p302) target = $region44
        $region43: #{tpu_custom_call.1} parent=39 // pred_region
          %305 = dma.done %s298, 2048
        $region44: #{tpu_custom_call.1} parent=39 // pred_fallthru
          _
        %s306 = sand.u32 %s28, 1
        %s307 = scalar_lea.sflag [#allocation7], %s306
        %s308 = sand.u32 %s74, 1
        %s309 = smul.addr %s308, 256
        %s310 = scalar_lea.vmem [#allocation6], %s309
        // Predicated region
        $region45: #{tpu_custom_call.1} parent=39 // pred_check
          %p311 = pneg %p87
        $region46: #{tpu_custom_call.1} parent=39 // pred_check_branch
          %313 = sbr.rel (%p311) target = $region48
        $region47: #{tpu_custom_call.1} parent=39 // pred_region
          %314 = dma.done %s307, 4096
        $region48: #{tpu_custom_call.1} parent=39 // pred_fallthru
          _
        %s315 = sand.u32 %s28, 1
        %s316 = scalar_lea.sflag [#allocation7], %s315
        %s317 = sand.u32 %s100, 1
        %s318 = smul.addr %s317, 2
        %s319 = scalar_lea.vmem [#allocation8], %s318
        // Predicated region
        $region49: #{tpu_custom_call.1} parent=39 // pred_check
          %p320 = pneg %p113
        $region50: #{tpu_custom_call.1} parent=39 // pred_check_branch
          %322 = sbr.rel (%p320) target = $region52
        $region51: #{tpu_custom_call.1} parent=39 // pred_region
          %323 = dma.done %s316, 32
        $region52: #{tpu_custom_call.1} parent=39 // pred_fallthru
          _
        %s324 = sand.u32 %s126, 1
        %s325 = scalar_lea.sflag [#allocation10], %s324
        %s326 = sand.u32 %s126, 1
        %s327 = smul.addr %s326, 256
        %s328 = scalar_lea.vmem [#allocation9], %s327
        // Predicated region
        $region53: #{tpu_custom_call.1} parent=39 // pred_check
          %p329 = pneg %p139
        $region54: #{tpu_custom_call.1} parent=39 // pred_check_branch
          %331 = sbr.rel (%p329) target = $region56
        $region55: #{tpu_custom_call.1} parent=39 // pred_region
          %332 = dma.done %s325, 4096
        $region56: #{tpu_custom_call.1} parent=39 // pred_fallthru
          _
        %s333 = sand.u32 %s48, 1
        %s334 = scalar_lea.sflag [#allocation4], %s333
        %s335 = sand.u32 %s48, 1
        %s336 = smul.addr %s335, 128
        %s337 = scalar_lea.vmem [#allocation3], %s336
        %p338 = pneg %p61
        %p339 = pneg %p58
        %s340 = sand.u32 %s28, 1
        %s341 = scalar_lea.sflag [#allocation7], %s340
        %s342 = sand.u32 %s74, 1
        %s343 = smul.addr %s342, 256
        %s344 = scalar_lea.vmem [#allocation6], %s343
        %p345 = pneg %p87
        %p346 = pneg %p84
        %s347 = sand.u32 %s28, 1
        %s348 = scalar_lea.sflag [#allocation7], %s347
        %s349 = sand.u32 %s100, 1
        %s350 = smul.addr %s349, 2
        %s351 = scalar_lea.vmem [#allocation8], %s350
        %p352 = pneg %p113
        %p353 = pneg %p110
        %s354 = sand.u32 %s126, 1
        %s355 = scalar_lea.sflag [#allocation10], %s354
        %s356 = sand.u32 %s126, 1
        %s357 = smul.addr %s356, 256
        %s358 = scalar_lea.vmem [#allocation9], %s357
        %p359 = pneg %p139
        %p360 = pneg %p136
        %p361 = pneg %p160
        %p362 = pneg %p157
        %p363 = pneg %p186
        %p364 = pneg %p183
        %s365 = sand.u32 %s173, 1
        %s366 = scalar_lea.sflag [#allocation5], %s365
        %s367 = sand.u32 %s173, 1
        %s368 = smul.addr %s367, 128
        %s369 = scalar_lea.vmem [#allocation11], %s368
        %s370 = smul.u32 16, %s32
        %s371 = smul.u32 32, %s33
        %s372 = smul.u32 2, %s33
        %s373 = smul.u32 2, %s33
        %s374 = smul.u32 16, %s32
        %p375 = scmp.eq.s32.totalorder %s33, 0
        // Predicated region
        $region57: #{tpu_custom_call.1} parent=39 // pred_check
          %p376 = pneg %p375
        $region58: #{tpu_custom_call.1} parent=39 // pred_check_branch
          %378 = sbr.rel (%p376) target = $region60
        $region59: #{tpu_custom_call.1} parent=39 // pred_region
          %379 = vst [vmem:[#allocation2] sm:$0xff] 0.0
          %380 = vst [vmem:[#allocation2 + $0x8] sm:$0xff] 0.0
          %381 = vst [vmem:[#allocation2 + $0x10] sm:$0xff] 0.0
          %382 = vst [vmem:[#allocation2 + $0x18] sm:$0xff] 0.0
          %383 = vst [vmem:[#allocation2 + $0x20] sm:$0xff] 0.0
          %384 = vst [vmem:[#allocation2 + $0x28] sm:$0xff] 0.0
          %385 = vst [vmem:[#allocation2 + $0x30] sm:$0xff] 0.0
          %386 = vst [vmem:[#allocation2 + $0x38] sm:$0xff] 0.0
          %387 = vst [vmem:[#allocation2 + $0x40] sm:$0xff] 0.0
          %388 = vst [vmem:[#allocation2 + $0x48] sm:$0xff] 0.0
          %389 = vst [vmem:[#allocation2 + $0x50] sm:$0xff] 0.0
          %390 = vst [vmem:[#allocation2 + $0x58] sm:$0xff] 0.0
          %391 = vst [vmem:[#allocation2 + $0x60] sm:$0xff] 0.0
          %392 = vst [vmem:[#allocation2 + $0x68] sm:$0xff] 0.0
          %393 = vst [vmem:[#allocation2 + $0x70] sm:$0xff] 0.0
          %394 = vst [vmem:[#allocation2 + $0x78] sm:$0xff] 0.0
        $region60: #{tpu_custom_call.1} parent=39 // pred_fallthru
          _
        %v395 = vld [vmem:[%s301] sm:$0xff]
        %v396 = vld [vmem:[%s301 + $0x8] sm:$0xff]
        %v397 = vld [vmem:[%s301 + $0x10] sm:$0xff]
        %v398 = vld [vmem:[%s301 + $0x18] sm:$0xff]
        %v399 = vld [vmem:[%s301 + $0x20] sm:$0xff]
        %v400 = vld [vmem:[%s301 + $0x28] sm:$0xff]
        %v401 = vld [vmem:[%s301 + $0x30] sm:$0xff]
        %v402 = vld [vmem:[%s301 + $0x38] sm:$0xff]
        %v403 = vld [vmem:[%s301 + $0x40] sm:$0xff]
        %v404 = vld [vmem:[%s301 + $0x48] sm:$0xff]
        %v405 = vld [vmem:[%s301 + $0x50] sm:$0xff]
        %v406 = vld [vmem:[%s301 + $0x58] sm:$0xff]
        %v407 = vld [vmem:[%s301 + $0x60] sm:$0xff]
        %v408 = vld [vmem:[%s301 + $0x68] sm:$0xff]
        %v409 = vld [vmem:[%s301 + $0x70] sm:$0xff]
        %v410 = vld [vmem:[%s301 + $0x78] sm:$0xff]
        %v411 = vld [vmem:[%s310] sm:$0xff]
        %v412 = vld [vmem:[%s310 + $0x8] sm:$0xff]
        %v413 = vld [vmem:[%s310 + $0x10] sm:$0xff]
        %v414 = vld [vmem:[%s310 + $0x18] sm:$0xff]
        %v415 = vld [vmem:[%s310 + $0x20] sm:$0xff]
        %v416 = vld [vmem:[%s310 + $0x28] sm:$0xff]
        %v417 = vld [vmem:[%s310 + $0x30] sm:$0xff]
        %v418 = vld [vmem:[%s310 + $0x38] sm:$0xff]
        %v419 = vld [vmem:[%s310 + $0x40] sm:$0xff]
        %v420 = vld [vmem:[%s310 + $0x48] sm:$0xff]
        %v421 = vld [vmem:[%s310 + $0x50] sm:$0xff]
        %v422 = vld [vmem:[%s310 + $0x58] sm:$0xff]
        %v423 = vld [vmem:[%s310 + $0x60] sm:$0xff]
        %v424 = vld [vmem:[%s310 + $0x68] sm:$0xff]
        %v425 = vld [vmem:[%s310 + $0x70] sm:$0xff]
        %v426 = vld [vmem:[%s310 + $0x78] sm:$0xff]
        %v427 = vld [vmem:[%s310 + $0x80] sm:$0xff]
        %v428 = vld [vmem:[%s310 + $0x88] sm:$0xff]
        %v429 = vld [vmem:[%s310 + $0x90] sm:$0xff]
        %v430 = vld [vmem:[%s310 + $0x98] sm:$0xff]
        %v431 = vld [vmem:[%s310 + $0xa0] sm:$0xff]
        %v432 = vld [vmem:[%s310 + $0xa8] sm:$0xff]
        %v433 = vld [vmem:[%s310 + $0xb0] sm:$0xff]
        %v434 = vld [vmem:[%s310 + $0xb8] sm:$0xff]
        %v435 = vld [vmem:[%s310 + $0xc0] sm:$0xff]
        %v436 = vld [vmem:[%s310 + $0xc8] sm:$0xff]
        %v437 = vld [vmem:[%s310 + $0xd0] sm:$0xff]
        %v438 = vld [vmem:[%s310 + $0xd8] sm:$0xff]
        %v439 = vld [vmem:[%s310 + $0xe0] sm:$0xff]
        %v440 = vld [vmem:[%s310 + $0xe8] sm:$0xff]
        %v441 = vld [vmem:[%s310 + $0xf0] sm:$0xff]
        %v442 = vld [vmem:[%s310 + $0xf8] sm:$0xff]
        %v443 = vld [vmem:[%s319] sm:$0x3]
        %v445 = vlaneseq
        %v446 = vshrl.u32 %v445, 7
        %v447 = vsub.s32 0, %v446
        %v448 = vrot.slane %v443, %v447
        %v449 = vlaneseq
        %v450 = vshrl.u32 %v449, 7
        %v451 = vsub.s32 1, %v450
        %v452 = vrot.slane %v443, %v451
        %455 = vmatprep.subr.mxu0 0.0
        %456 = vmatpush1.xpose.msra.mxu0 %v426
        %457 = vmatprep.subr.mxu0 0.0
        %458 = vmatpush1.xpose.msra.mxu0 %v425
        %459 = vmatprep.subr.mxu0 0.0
        %460 = vmatpush1.xpose.msra.mxu0 %v424
        %461 = vmatprep.subr.mxu0 0.0
        %462 = vmatpush1.xpose.msra.mxu0 %v423
        %463 = vmatprep.subr.mxu0 0.0
        %464 = vmatpush1.xpose.msra.mxu0 %v422
        %465 = vmatprep.subr.mxu0 0.0
        %466 = vmatpush1.xpose.msra.mxu0 %v421
        %467 = vmatprep.subr.mxu0 0.0
        %468 = vmatpush1.xpose.msra.mxu0 %v420
        %469 = vmatprep.subr.mxu0 0.0
        %470 = vmatpush1.xpose.msra.mxu0 %v419
        %471 = vmatprep.subr.mxu0 0.0
        %472 = vmatpush1.xpose.msra.mxu0 %v418
        %473 = vmatprep.subr.mxu0 0.0
        %474 = vmatpush1.xpose.msra.mxu0 %v417
        %475 = vmatprep.subr.mxu0 0.0
        %476 = vmatpush1.xpose.msra.mxu0 %v416
        %477 = vmatprep.subr.mxu0 0.0
        %478 = vmatpush1.xpose.msra.mxu0 %v415
        %479 = vmatprep.subr.mxu0 0.0
        %480 = vmatpush1.xpose.msra.mxu0 %v414
        %481 = vmatprep.subr.mxu0 0.0
        %482 = vmatpush1.xpose.msra.mxu0 %v413
        %483 = vmatprep.subr.mxu0 0.0
        %484 = vmatpush1.xpose.msra.mxu0 %v412
        %485 = vmatprep.subr.mxu0 0.0
        %486 = vmatpush1.xpose.msra.mxu0 %v411
        %487 = vmatprep.subr.mxu0 0.0
        %488 = vmatpush2.xpose.msra.mxu0 %v442
        %489 = vmatprep.subr.mxu0 0.0
        %490 = vmatpush2.xpose.msra.mxu0 %v441
        %491 = vmatprep.subr.mxu0 0.0
        %492 = vmatpush2.xpose.msra.mxu0 %v440
        %493 = vmatprep.subr.mxu0 0.0
        %494 = vmatpush2.xpose.msra.mxu0 %v439
        %495 = vmatprep.subr.mxu0 0.0
        %496 = vmatpush2.xpose.msra.mxu0 %v438
        %497 = vmatprep.subr.mxu0 0.0
        %498 = vmatpush2.xpose.msra.mxu0 %v437
        %499 = vmatprep.subr.mxu0 0.0
        %500 = vmatpush2.xpose.msra.mxu0 %v436
        %501 = vmatprep.subr.mxu0 0.0
        %502 = vmatpush2.xpose.msra.mxu0 %v435
        %503 = vmatprep.subr.mxu0 0.0
        %504 = vmatpush2.xpose.msra.mxu0 %v434
        %505 = vmatprep.subr.mxu0 0.0
        %506 = vmatpush2.xpose.msra.mxu0 %v433
        %507 = vmatprep.subr.mxu0 0.0
        %508 = vmatpush2.xpose.msra.mxu0 %v432
        %509 = vmatprep.subr.mxu0 0.0
        %510 = vmatpush2.xpose.msra.mxu0 %v431
        %511 = vmatprep.subr.mxu0 0.0
        %512 = vmatpush2.xpose.msra.mxu0 %v430
        %513 = vmatprep.subr.mxu0 0.0
        %514 = vmatpush2.xpose.msra.mxu0 %v429
        %515 = vmatprep.subr.mxu0 0.0
        %516 = vmatpush2.xpose.msra.mxu0 %v428
        %517 = vmatprep.subr.mxu0 0.0
        %518 = vmatpush2.xpose.msra.mxu0 %v427
        %519 = vmatprep.mubr.f32.mxu0 0.0
        %520 = vmatmul.mubr.f32.gmra.mxu0 %v395
        %v521 = vpop.f32.mrf.mxu0
        %v522 = vadd.f32 %v448, %v521
        %v523 = vpop.f32.mrf.mxu0
        %v524 = vadd.f32 %v452, %v523
        %525 = vmatprep.mubr.f32.mxu0 0.0
        %526 = vmatmul.mubr.f32.gmra.mxu0 %v396
        %v527 = vpop.f32.mrf.mxu0
        %v528 = vadd.f32 %v448, %v527
        %v529 = vpop.f32.mrf.mxu0
        %v530 = vadd.f32 %v452, %v529
        %531 = vmatprep.mubr.f32.mxu0 0.0
        %532 = vmatmul.mubr.f32.gmra.mxu0 %v397
        %v533 = vpop.f32.mrf.mxu0
        %v534 = vadd.f32 %v448, %v533
        %v535 = vpop.f32.mrf.mxu0
        %v536 = vadd.f32 %v452, %v535
        %537 = vmatprep.mubr.f32.mxu0 0.0
        %538 = vmatmul.mubr.f32.gmra.mxu0 %v398
        %v539 = vpop.f32.mrf.mxu0
        %v540 = vadd.f32 %v448, %v539
        %v541 = vpop.f32.mrf.mxu0
        %v542 = vadd.f32 %v452, %v541
        %543 = vmatprep.mubr.f32.mxu0 0.0
        %544 = vmatmul.mubr.f32.gmra.mxu0 %v399
        %v545 = vpop.f32.mrf.mxu0
        %v546 = vadd.f32 %v448, %v545
        %v547 = vpop.f32.mrf.mxu0
        %v548 = vadd.f32 %v452, %v547
        %549 = vmatprep.mubr.f32.mxu0 0.0
        %550 = vmatmul.mubr.f32.gmra.mxu0 %v400
        %v551 = vpop.f32.mrf.mxu0
        %v552 = vadd.f32 %v448, %v551
        %v553 = vpop.f32.mrf.mxu0
        %v554 = vadd.f32 %v452, %v553
        %555 = vmatprep.mubr.f32.mxu0 0.0
        %556 = vmatmul.mubr.f32.gmra.mxu0 %v401
        %v557 = vpop.f32.mrf.mxu0
        %v558 = vadd.f32 %v448, %v557
        %v559 = vpop.f32.mrf.mxu0
        %v560 = vadd.f32 %v452, %v559
        %561 = vmatprep.mubr.f32.mxu0 0.0
        %562 = vmatmul.mubr.f32.gmra.mxu0 %v402
        %v563 = vpop.f32.mrf.mxu0
        %v564 = vadd.f32 %v448, %v563
        %v565 = vpop.f32.mrf.mxu0
        %v566 = vadd.f32 %v452, %v565
        %567 = vmatprep.mubr.f32.mxu0 0.0
        %568 = vmatmul.mubr.f32.gmra.mxu0 %v403
        %v569 = vpop.f32.mrf.mxu0
        %v570 = vadd.f32 %v448, %v569
        %v571 = vpop.f32.mrf.mxu0
        %v572 = vadd.f32 %v452, %v571
        %573 = vmatprep.mubr.f32.mxu0 0.0
        %574 = vmatmul.mubr.f32.gmra.mxu0 %v404
        %v575 = vpop.f32.mrf.mxu0
        %v576 = vadd.f32 %v448, %v575
        %v577 = vpop.f32.mrf.mxu0
        %v578 = vadd.f32 %v452, %v577
        %579 = vmatprep.mubr.f32.mxu0 0.0
        %580 = vmatmul.mubr.f32.gmra.mxu0 %v405
        %v581 = vpop.f32.mrf.mxu0
        %v582 = vadd.f32 %v448, %v581
        %v583 = vpop.f32.mrf.mxu0
        %v584 = vadd.f32 %v452, %v583
        %585 = vmatprep.mubr.f32.mxu0 0.0
        %586 = vmatmul.mubr.f32.gmra.mxu0 %v406
        %v587 = vpop.f32.mrf.mxu0
        %v588 = vadd.f32 %v448, %v587
        %v589 = vpop.f32.mrf.mxu0
        %v590 = vadd.f32 %v452, %v589
        %591 = vmatprep.mubr.f32.mxu0 0.0
        %592 = vmatmul.mubr.f32.gmra.mxu0 %v407
        %v593 = vpop.f32.mrf.mxu0
        %v594 = vadd.f32 %v448, %v593
        %v595 = vpop.f32.mrf.mxu0
        %v596 = vadd.f32 %v452, %v595
        %597 = vmatprep.mubr.f32.mxu0 0.0
        %598 = vmatmul.mubr.f32.gmra.mxu0 %v408
        %v599 = vpop.f32.mrf.mxu0
        %v600 = vadd.f32 %v448, %v599
        %v601 = vpop.f32.mrf.mxu0
        %v602 = vadd.f32 %v452, %v601
        %603 = vmatprep.mubr.f32.mxu0 0.0
        %604 = vmatmul.mubr.f32.gmra.mxu0 %v409
        %v605 = vpop.f32.mrf.mxu0
        %v606 = vadd.f32 %v448, %v605
        %v607 = vpop.f32.mrf.mxu0
        %v608 = vadd.f32 %v452, %v607
        %609 = vmatprep.mubr.f32.mxu0 0.0
        %610 = vmatmul.mubr.f32.gmra.mxu0 %v410
        %v611 = vpop.f32.mrf.mxu0
        %v612 = vadd.f32 %v448, %v611
        %v613 = vpop.f32.mrf.mxu0
        %v614 = vadd.f32 %v452, %v613
        %615 = vdwg.mxu0
        %v616 = vmul.f32 %v522, 0.5
        %v617 = vmul.f32 %v524, 0.5
        %v618 = vmul.f32 %v528, 0.5
        %v619 = vmul.f32 %v530, 0.5
        %v620 = vmul.f32 %v534, 0.5
        %v621 = vmul.f32 %v536, 0.5
        %v622 = vmul.f32 %v540, 0.5
        %v623 = vmul.f32 %v542, 0.5
        %v624 = vmul.f32 %v546, 0.5
        %v625 = vmul.f32 %v548, 0.5
        %v626 = vmul.f32 %v552, 0.5
        %v627 = vmul.f32 %v554, 0.5
        %v628 = vmul.f32 %v558, 0.5
        %v629 = vmul.f32 %v560, 0.5
        %v630 = vmul.f32 %v564, 0.5
        %v631 = vmul.f32 %v566, 0.5
        %v632 = vmul.f32 %v570, 0.5
        %v633 = vmul.f32 %v572, 0.5
        %v634 = vmul.f32 %v576, 0.5
        %v635 = vmul.f32 %v578, 0.5
        %v636 = vmul.f32 %v582, 0.5
        %v637 = vmul.f32 %v584, 0.5
        %v638 = vmul.f32 %v588, 0.5
        %v639 = vmul.f32 %v590, 0.5
        %v640 = vmul.f32 %v594, 0.5
        %v641 = vmul.f32 %v596, 0.5
        %v642 = vmul.f32 %v600, 0.5
        %v643 = vmul.f32 %v602, 0.5
        %v644 = vmul.f32 %v606, 0.5
        %v645 = vmul.f32 %v608, 0.5
        %v646 = vmul.f32 %v612, 0.5
        %v647 = vmul.f32 %v614, 0.5
        %v648 = vmul.f32 %v522, %v522
        %v649 = vmul.f32 %v524, %v524
        %v650 = vmul.f32 %v528, %v528
        %v651 = vmul.f32 %v530, %v530
        %v652 = vmul.f32 %v534, %v534
        %v653 = vmul.f32 %v536, %v536
        %v654 = vmul.f32 %v540, %v540
        %v655 = vmul.f32 %v542, %v542
        %v656 = vmul.f32 %v546, %v546
        %v657 = vmul.f32 %v548, %v548
        %v658 = vmul.f32 %v552, %v552
        %v659 = vmul.f32 %v554, %v554
        %v660 = vmul.f32 %v558, %v558
        %v661 = vmul.f32 %v560, %v560
        %v662 = vmul.f32 %v564, %v564
        %v663 = vmul.f32 %v566, %v566
        %v664 = vmul.f32 %v570, %v570
        %v665 = vmul.f32 %v572, %v572
        %v666 = vmul.f32 %v576, %v576
        %v667 = vmul.f32 %v578, %v578
        %v668 = vmul.f32 %v582, %v582
        %v669 = vmul.f32 %v584, %v584
        %v670 = vmul.f32 %v588, %v588
        %v671 = vmul.f32 %v590, %v590
        %v672 = vmul.f32 %v594, %v594
        %v673 = vmul.f32 %v596, %v596
        %v674 = vmul.f32 %v600, %v600
        %v675 = vmul.f32 %v602, %v602
        %v676 = vmul.f32 %v606, %v606
        %v677 = vmul.f32 %v608, %v608
        %v678 = vmul.f32 %v612, %v612
        %v679 = vmul.f32 %v614, %v614
        %v680 = vmul.f32 %v648, %v522
        %v681 = vmul.f32 %v649, %v524
        %v682 = vmul.f32 %v650, %v528
        %v683 = vmul.f32 %v651, %v530
        %v684 = vmul.f32 %v652, %v534
        %v685 = vmul.f32 %v653, %v536
        %v686 = vmul.f32 %v654, %v540
        %v687 = vmul.f32 %v655, %v542
        %v688 = vmul.f32 %v656, %v546
        %v689 = vmul.f32 %v657, %v548
        %v690 = vmul.f32 %v658, %v552
        %v691 = vmul.f32 %v659, %v554
        %v692 = vmul.f32 %v660, %v558
        %v693 = vmul.f32 %v661, %v560
        %v694 = vmul.f32 %v662, %v564
        %v695 = vmul.f32 %v663, %v566
        %v696 = vmul.f32 %v664, %v570
        %v697 = vmul.f32 %v665, %v572
        %v698 = vmul.f32 %v666, %v576
        %v699 = vmul.f32 %v667, %v578
        %v700 = vmul.f32 %v668, %v582
        %v701 = vmul.f32 %v669, %v584
        %v702 = vmul.f32 %v670, %v588
        %v703 = vmul.f32 %v671, %v590
        %v704 = vmul.f32 %v672, %v594
        %v705 = vmul.f32 %v673, %v596
        %v706 = vmul.f32 %v674, %v600
        %v707 = vmul.f32 %v675, %v602
        %v708 = vmul.f32 %v676, %v606
        %v709 = vmul.f32 %v677, %v608
        %v710 = vmul.f32 %v678, %v612
        %v711 = vmul.f32 %v679, %v614
        %v712 = vmul.f32 %v680, 0.044715
        %v713 = vmul.f32 %v681, 0.044715
        %v714 = vmul.f32 %v682, 0.044715
        %v715 = vmul.f32 %v683, 0.044715
        %v716 = vmul.f32 %v684, 0.044715
        %v717 = vmul.f32 %v685, 0.044715
        %v718 = vmul.f32 %v686, 0.044715
        %v719 = vmul.f32 %v687, 0.044715
        %v720 = vmul.f32 %v688, 0.044715
        %v721 = vmul.f32 %v689, 0.044715
        %v722 = vmul.f32 %v690, 0.044715
        %v723 = vmul.f32 %v691, 0.044715
        %v724 = vmul.f32 %v692, 0.044715
        %v725 = vmul.f32 %v693, 0.044715
        %v726 = vmul.f32 %v694, 0.044715
        %v727 = vmul.f32 %v695, 0.044715
        %v728 = vmul.f32 %v696, 0.044715
        %v729 = vmul.f32 %v697, 0.044715
        %v730 = vmul.f32 %v698, 0.044715
        %v731 = vmul.f32 %v699, 0.044715
        %v732 = vmul.f32 %v700, 0.044715
        %v733 = vmul.f32 %v701, 0.044715
        %v734 = vmul.f32 %v702, 0.044715
        %v735 = vmul.f32 %v703, 0.044715
        %v736 = vmul.f32 %v704, 0.044715
        %v737 = vmul.f32 %v705, 0.044715
        %v738 = vmul.f32 %v706, 0.044715
        %v739 = vmul.f32 %v707, 0.044715
        %v740 = vmul.f32 %v708, 0.044715
        %v741 = vmul.f32 %v709, 0.044715
        %v742 = vmul.f32 %v710, 0.044715
        %v743 = vmul.f32 %v711, 0.044715
        %v744 = vadd.f32 %v522, %v712
        %v745 = vadd.f32 %v524, %v713
        %v746 = vadd.f32 %v528, %v714
        %v747 = vadd.f32 %v530, %v715
        %v748 = vadd.f32 %v534, %v716
        %v749 = vadd.f32 %v536, %v717
        %v750 = vadd.f32 %v540, %v718
        %v751 = vadd.f32 %v542, %v719
        %v752 = vadd.f32 %v546, %v720
        %v753 = vadd.f32 %v548, %v721
        %v754 = vadd.f32 %v552, %v722
        %v755 = vadd.f32 %v554, %v723
        %v756 = vadd.f32 %v558, %v724
        %v757 = vadd.f32 %v560, %v725
        %v758 = vadd.f32 %v564, %v726
        %v759 = vadd.f32 %v566, %v727
        %v760 = vadd.f32 %v570, %v728
        %v761 = vadd.f32 %v572, %v729
        %v762 = vadd.f32 %v576, %v730
        %v763 = vadd.f32 %v578, %v731
        %v764 = vadd.f32 %v582, %v732
        %v765 = vadd.f32 %v584, %v733
        %v766 = vadd.f32 %v588, %v734
        %v767 = vadd.f32 %v590, %v735
        %v768 = vadd.f32 %v594, %v736
        %v769 = vadd.f32 %v596, %v737
        %v770 = vadd.f32 %v600, %v738
        %v771 = vadd.f32 %v602, %v739
        %v772 = vadd.f32 %v606, %v740
        %v773 = vadd.f32 %v608, %v741
        %v774 = vadd.f32 %v612, %v742
        %v775 = vadd.f32 %v614, %v743
        %v776 = vmul.f32 %v744, 0.7978846
        %v777 = vmul.f32 %v745, 0.7978846
        %v778 = vmul.f32 %v746, 0.7978846
        %v779 = vmul.f32 %v747, 0.7978846
        %v780 = vmul.f32 %v748, 0.7978846
        %v781 = vmul.f32 %v749, 0.7978846
        %v782 = vmul.f32 %v750, 0.7978846
        %v783 = vmul.f32 %v751, 0.7978846
        %v784 = vmul.f32 %v752, 0.7978846
        %v785 = vmul.f32 %v753, 0.7978846
        %v786 = vmul.f32 %v754, 0.7978846
        %v787 = vmul.f32 %v755, 0.7978846
        %v788 = vmul.f32 %v756, 0.7978846
        %v789 = vmul.f32 %v757, 0.7978846
        %v790 = vmul.f32 %v758, 0.7978846
        %v791 = vmul.f32 %v759, 0.7978846
        %v792 = vmul.f32 %v760, 0.7978846
        %v793 = vmul.f32 %v761, 0.7978846
        %v794 = vmul.f32 %v762, 0.7978846
        %v795 = vmul.f32 %v763, 0.7978846
        %v796 = vmul.f32 %v764, 0.7978846
        %v797 = vmul.f32 %v765, 0.7978846
        %v798 = vmul.f32 %v766, 0.7978846
        %v799 = vmul.f32 %v767, 0.7978846
        %v800 = vmul.f32 %v768, 0.7978846
        %v801 = vmul.f32 %v769, 0.7978846
        %v802 = vmul.f32 %v770, 0.7978846
        %v803 = vmul.f32 %v771, 0.7978846
        %v804 = vmul.f32 %v772, 0.7978846
        %v805 = vmul.f32 %v773, 0.7978846
        %v806 = vmul.f32 %v774, 0.7978846
        %v807 = vmul.f32 %v775, 0.7978846
        %v808 = vtanh.pop %v776
        %v809 = vtanh.pop %v777
        %v810 = vtanh.pop %v778
        %v811 = vtanh.pop %v779
        %v812 = vtanh.pop %v780
        %v813 = vtanh.pop %v781
        %v814 = vtanh.pop %v782
        %v815 = vtanh.pop %v783
        %v816 = vtanh.pop %v784
        %v817 = vtanh.pop %v785
        %v818 = vtanh.pop %v786
        %v819 = vtanh.pop %v787
        %v820 = vtanh.pop %v788
        %v821 = vtanh.pop %v789
        %v822 = vtanh.pop %v790
        %v823 = vtanh.pop %v791
        %v824 = vtanh.pop %v792
        %v825 = vtanh.pop %v793
        %v826 = vtanh.pop %v794
        %v827 = vtanh.pop %v795
        %v828 = vtanh.pop %v796
        %v829 = vtanh.pop %v797
        %v830 = vtanh.pop %v798
        %v831 = vtanh.pop %v799
        %v832 = vtanh.pop %v800
        %v833 = vtanh.pop %v801
        %v834 = vtanh.pop %v802
        %v835 = vtanh.pop %v803
        %v836 = vtanh.pop %v804
        %v837 = vtanh.pop %v805
        %v838 = vtanh.pop %v806
        %v839 = vtanh.pop %v807
        %v840 = vadd.f32 %v808, 1.0
        %v841 = vadd.f32 %v809, 1.0
        %v842 = vadd.f32 %v810, 1.0
        %v843 = vadd.f32 %v811, 1.0
        %v844 = vadd.f32 %v812, 1.0
        %v845 = vadd.f32 %v813, 1.0
        %v846 = vadd.f32 %v814, 1.0
        %v847 = vadd.f32 %v815, 1.0
        %v848 = vadd.f32 %v816, 1.0
        %v849 = vadd.f32 %v817, 1.0
        %v850 = vadd.f32 %v818, 1.0
        %v851 = vadd.f32 %v819, 1.0
        %v852 = vadd.f32 %v820, 1.0
        %v853 = vadd.f32 %v821, 1.0
        %v854 = vadd.f32 %v822, 1.0
        %v855 = vadd.f32 %v823, 1.0
        %v856 = vadd.f32 %v824, 1.0
        %v857 = vadd.f32 %v825, 1.0
        %v858 = vadd.f32 %v826, 1.0
        %v859 = vadd.f32 %v827, 1.0
        %v860 = vadd.f32 %v828, 1.0
        %v861 = vadd.f32 %v829, 1.0
        %v862 = vadd.f32 %v830, 1.0
        %v863 = vadd.f32 %v831, 1.0
        %v864 = vadd.f32 %v832, 1.0
        %v865 = vadd.f32 %v833, 1.0
        %v866 = vadd.f32 %v834, 1.0
        %v867 = vadd.f32 %v835, 1.0
        %v868 = vadd.f32 %v836, 1.0
        %v869 = vadd.f32 %v837, 1.0
        %v870 = vadd.f32 %v838, 1.0
        %v871 = vadd.f32 %v839, 1.0
        %v872 = vmul.f32 %v616, %v840
        %v873 = vmul.f32 %v617, %v841
        %v874 = vmul.f32 %v618, %v842
        %v875 = vmul.f32 %v619, %v843
        %v876 = vmul.f32 %v620, %v844
        %v877 = vmul.f32 %v621, %v845
        %v878 = vmul.f32 %v622, %v846
        %v879 = vmul.f32 %v623, %v847
        %v880 = vmul.f32 %v624, %v848
        %v881 = vmul.f32 %v625, %v849
        %v882 = vmul.f32 %v626, %v850
        %v883 = vmul.f32 %v627, %v851
        %v884 = vmul.f32 %v628, %v852
        %v885 = vmul.f32 %v629, %v853
        %v886 = vmul.f32 %v630, %v854
        %v887 = vmul.f32 %v631, %v855
        %v888 = vmul.f32 %v632, %v856
        %v889 = vmul.f32 %v633, %v857
        %v890 = vmul.f32 %v634, %v858
        %v891 = vmul.f32 %v635, %v859
        %v892 = vmul.f32 %v636, %v860
        %v893 = vmul.f32 %v637, %v861
        %v894 = vmul.f32 %v638, %v862
        %v895 = vmul.f32 %v639, %v863
        %v896 = vmul.f32 %v640, %v864
        %v897 = vmul.f32 %v641, %v865
        %v898 = vmul.f32 %v642, %v866
        %v899 = vmul.f32 %v643, %v867
        %v900 = vmul.f32 %v644, %v868
        %v901 = vmul.f32 %v645, %v869
        %v902 = vmul.f32 %v646, %v870
        %v903 = vmul.f32 %v647, %v871
        %v904 = vld [vmem:[#allocation2] sm:$0xff]
        %v905 = vld [vmem:[#allocation2 + $0x8] sm:$0xff]
        %v906 = vld [vmem:[#allocation2 + $0x10] sm:$0xff]
        %v907 = vld [vmem:[#allocation2 + $0x18] sm:$0xff]
        %v908 = vld [vmem:[#allocation2 + $0x20] sm:$0xff]
        %v909 = vld [vmem:[#allocation2 + $0x28] sm:$0xff]
        %v910 = vld [vmem:[#allocation2 + $0x30] sm:$0xff]
        %v911 = vld [vmem:[#allocation2 + $0x38] sm:$0xff]
        %v912 = vld [vmem:[#allocation2 + $0x40] sm:$0xff]
        %v913 = vld [vmem:[#allocation2 + $0x48] sm:$0xff]
        %v914 = vld [vmem:[#allocation2 + $0x50] sm:$0xff]
        %v915 = vld [vmem:[#allocation2 + $0x58] sm:$0xff]
        %v916 = vld [vmem:[#allocation2 + $0x60] sm:$0xff]
        %v917 = vld [vmem:[#allocation2 + $0x68] sm:$0xff]
        %v918 = vld [vmem:[#allocation2 + $0x70] sm:$0xff]
        %v919 = vld [vmem:[#allocation2 + $0x78] sm:$0xff]
        %v920 = vld [vmem:[%s328] sm:$0xff]
        %v921 = vld [vmem:[%s328 + $0x8] sm:$0xff]
        %v922 = vld [vmem:[%s328 + $0x10] sm:$0xff]
        %v923 = vld [vmem:[%s328 + $0x18] sm:$0xff]
        %v924 = vld [vmem:[%s328 + $0x20] sm:$0xff]
        %v925 = vld [vmem:[%s328 + $0x28] sm:$0xff]
        %v926 = vld [vmem:[%s328 + $0x30] sm:$0xff]
        %v927 = vld [vmem:[%s328 + $0x38] sm:$0xff]
        %v928 = vld [vmem:[%s328 + $0x40] sm:$0xff]
        %v929 = vld [vmem:[%s328 + $0x48] sm:$0xff]
        %v930 = vld [vmem:[%s328 + $0x50] sm:$0xff]
        %v931 = vld [vmem:[%s328 + $0x58] sm:$0xff]
        %v932 = vld [vmem:[%s328 + $0x60] sm:$0xff]
        %v933 = vld [vmem:[%s328 + $0x68] sm:$0xff]
        %v934 = vld [vmem:[%s328 + $0x70] sm:$0xff]
        %v935 = vld [vmem:[%s328 + $0x78] sm:$0xff]
        %v936 = vld [vmem:[%s328 + $0x80] sm:$0xff]
        %v937 = vld [vmem:[%s328 + $0x88] sm:$0xff]
        %v938 = vld [vmem:[%s328 + $0x90] sm:$0xff]
        %v939 = vld [vmem:[%s328 + $0x98] sm:$0xff]
        %v940 = vld [vmem:[%s328 + $0xa0] sm:$0xff]
        %v941 = vld [vmem:[%s328 + $0xa8] sm:$0xff]
        %v942 = vld [vmem:[%s328 + $0xb0] sm:$0xff]
        %v943 = vld [vmem:[%s328 + $0xb8] sm:$0xff]
        %v944 = vld [vmem:[%s328 + $0xc0] sm:$0xff]
        %v945 = vld [vmem:[%s328 + $0xc8] sm:$0xff]
        %v946 = vld [vmem:[%s328 + $0xd0] sm:$0xff]
        %v947 = vld [vmem:[%s328 + $0xd8] sm:$0xff]
        %v948 = vld [vmem:[%s328 + $0xe0] sm:$0xff]
        %v949 = vld [vmem:[%s328 + $0xe8] sm:$0xff]
        %v950 = vld [vmem:[%s328 + $0xf0] sm:$0xff]
        %v951 = vld [vmem:[%s328 + $0xf8] sm:$0xff]
        %952 = vmatprep.subr.mxu0 %v951
        %953 = vmatpush1.xpose.msra.mxu0 %v950
        %954 = vmatprep.subr.mxu0 %v949
        %955 = vmatpush1.xpose.msra.mxu0 %v948
        %956 = vmatprep.subr.mxu0 %v947
        %957 = vmatpush1.xpose.msra.mxu0 %v946
        %958 = vmatprep.subr.mxu0 %v945
        %959 = vmatpush1.xpose.msra.mxu0 %v944
        %960 = vmatprep.subr.mxu0 %v943
        %961 = vmatpush1.xpose.msra.mxu0 %v942
        %962 = vmatprep.subr.mxu0 %v941
        %963 = vmatpush1.xpose.msra.mxu0 %v940
        %964 = vmatprep.subr.mxu0 %v939
        %965 = vmatpush1.xpose.msra.mxu0 %v938
        %966 = vmatprep.subr.mxu0 %v937
        %967 = vmatpush1.xpose.msra.mxu0 %v936
        %968 = vmatprep.subr.mxu0 %v935
        %969 = vmatpush1.xpose.msra.mxu0 %v934
        %970 = vmatprep.subr.mxu0 %v933
        %971 = vmatpush1.xpose.msra.mxu0 %v932
        %972 = vmatprep.subr.mxu0 %v931
        %973 = vmatpush1.xpose.msra.mxu0 %v930
        %974 = vmatprep.subr.mxu0 %v929
        %975 = vmatpush1.xpose.msra.mxu0 %v928
        %976 = vmatprep.subr.mxu0 %v927
        %977 = vmatpush1.xpose.msra.mxu0 %v926
        %978 = vmatprep.subr.mxu0 %v925
        %979 = vmatpush1.xpose.msra.mxu0 %v924
        %980 = vmatprep.subr.mxu0 %v923
        %981 = vmatpush1.xpose.msra.mxu0 %v922
        %982 = vmatprep.subr.mxu0 %v921
        %983 = vmatpush1.xpose.msra.mxu0 %v920
        %984 = vmatprep.subr.mxu0 0.0
        %985 = vmatpush2.xpose.msra.mxu0 0.0
        %986 = vmatprep.subr.mxu0 0.0
        %987 = vmatpush2.xpose.msra.mxu0 0.0
        %988 = vmatprep.subr.mxu0 0.0
        %989 = vmatpush2.xpose.msra.mxu0 0.0
        %990 = vmatprep.subr.mxu0 0.0
        %991 = vmatpush2.xpose.msra.mxu0 0.0
        %992 = vmatprep.subr.mxu0 0.0
        %993 = vmatpush2.xpose.msra.mxu0 0.0
        %994 = vmatprep.subr.mxu0 0.0
        %995 = vmatpush2.xpose.msra.mxu0 0.0
        %996 = vmatprep.subr.mxu0 0.0
        %997 = vmatpush2.xpose.msra.mxu0 0.0
        %998 = vmatprep.subr.mxu0 0.0
        %999 = vmatpush2.xpose.msra.mxu0 0.0
        %1000 = vmatprep.subr.mxu0 0.0
        %1001 = vmatpush2.xpose.msra.mxu0 0.0
        %1002 = vmatprep.subr.mxu0 0.0
        %1003 = vmatpush2.xpose.msra.mxu0 0.0
        %1004 = vmatprep.subr.mxu0 0.0
        %1005 = vmatpush2.xpose.msra.mxu0 0.0
        %1006 = vmatprep.subr.mxu0 0.0
        %1007 = vmatpush2.xpose.msra.mxu0 0.0
        %1008 = vmatprep.subr.mxu0 0.0
        %1009 = vmatpush2.xpose.msra.mxu0 0.0
        %1010 = vmatprep.subr.mxu0 0.0
        %1011 = vmatpush2.xpose.msra.mxu0 0.0
        %1012 = vmatprep.subr.mxu0 0.0
        %1013 = vmatpush2.xpose.msra.mxu0 0.0
        %1014 = vmatprep.subr.mxu0 0.0
        %1015 = vmatpush2.xpose.msra.mxu0 0.0
        %1016 = vmatprep.mubr.f32.mxu0 %v873
        %1017 = vmatmul.mubr.f32.gmra.mxu0 %v872
        %v1018 = vpop.f32.mrf.mxu0
        %v1019 = vadd.f32 0.0, %v1018
        %v1020 = vpop.f32.mrf.mxu0
        %1021 = vmatprep.mubr.f32.mxu0 %v875
        %1022 = vmatmul.mubr.f32.gmra.mxu0 %v874
        %v1023 = vpop.f32.mrf.mxu0
        %v1024 = vadd.f32 0.0, %v1023
        %v1025 = vpop.f32.mrf.mxu0
        %1026 = vmatprep.mubr.f32.mxu0 %v877
        %1027 = vmatmul.mubr.f32.gmra.mxu0 %v876
        %v1028 = vpop.f32.mrf.mxu0
        %v1029 = vadd.f32 0.0, %v1028
        %v1030 = vpop.f32.mrf.mxu0
        %1031 = vmatprep.mubr.f32.mxu0 %v879
        %1032 = vmatmul.mubr.f32.gmra.mxu0 %v878
        %v1033 = vpop.f32.mrf.mxu0
        %v1034 = vadd.f32 0.0, %v1033
        %v1035 = vpop.f32.mrf.mxu0
        %1036 = vmatprep.mubr.f32.mxu0 %v881
        %1037 = vmatmul.mubr.f32.gmra.mxu0 %v880
        %v1038 = vpop.f32.mrf.mxu0
        %v1039 = vadd.f32 0.0, %v1038
        %v1040 = vpop.f32.mrf.mxu0
        %1041 = vmatprep.mubr.f32.mxu0 %v883
        %1042 = vmatmul.mubr.f32.gmra.mxu0 %v882
        %v1043 = vpop.f32.mrf.mxu0
        %v1044 = vadd.f32 0.0, %v1043
        %v1045 = vpop.f32.mrf.mxu0
        %1046 = vmatprep.mubr.f32.mxu0 %v885
        %1047 = vmatmul.mubr.f32.gmra.mxu0 %v884
        %v1048 = vpop.f32.mrf.mxu0
        %v1049 = vadd.f32 0.0, %v1048
        %v1050 = vpop.f32.mrf.mxu0
        %1051 = vmatprep.mubr.f32.mxu0 %v887
        %1052 = vmatmul.mubr.f32.gmra.mxu0 %v886
        %v1053 = vpop.f32.mrf.mxu0
        %v1054 = vadd.f32 0.0, %v1053
        %v1055 = vpop.f32.mrf.mxu0
        %1056 = vmatprep.mubr.f32.mxu0 %v889
        %1057 = vmatmul.mubr.f32.gmra.mxu0 %v888
        %v1058 = vpop.f32.mrf.mxu0
        %v1059 = vadd.f32 0.0, %v1058
        %v1060 = vpop.f32.mrf.mxu0
        %1061 = vmatprep.mubr.f32.mxu0 %v891
        %1062 = vmatmul.mubr.f32.gmra.mxu0 %v890
        %v1063 = vpop.f32.mrf.mxu0
        %v1064 = vadd.f32 0.0, %v1063
        %v1065 = vpop.f32.mrf.mxu0
        %1066 = vmatprep.mubr.f32.mxu0 %v893
        %1067 = vmatmul.mubr.f32.gmra.mxu0 %v892
        %v1068 = vpop.f32.mrf.mxu0
        %v1069 = vadd.f32 0.0, %v1068
        %v1070 = vpop.f32.mrf.mxu0
        %1071 = vmatprep.mubr.f32.mxu0 %v895
        %1072 = vmatmul.mubr.f32.gmra.mxu0 %v894
        %v1073 = vpop.f32.mrf.mxu0
        %v1074 = vadd.f32 0.0, %v1073
        %v1075 = vpop.f32.mrf.mxu0
        %1076 = vmatprep.mubr.f32.mxu0 %v897
        %1077 = vmatmul.mubr.f32.gmra.mxu0 %v896
        %v1078 = vpop.f32.mrf.mxu0
        %v1079 = vadd.f32 0.0, %v1078
        %v1080 = vpop.f32.mrf.mxu0
        %1081 = vmatprep.mubr.f32.mxu0 %v899
        %1082 = vmatmul.mubr.f32.gmra.mxu0 %v898
        %v1083 = vpop.f32.mrf.mxu0
        %v1084 = vadd.f32 0.0, %v1083
        %v1085 = vpop.f32.mrf.mxu0
        %1086 = vmatprep.mubr.f32.mxu0 %v901
        %1087 = vmatmul.mubr.f32.gmra.mxu0 %v900
        %v1088 = vpop.f32.mrf.mxu0
        %v1089 = vadd.f32 0.0, %v1088
        %v1090 = vpop.f32.mrf.mxu0
        %1091 = vmatprep.mubr.f32.mxu0 %v903
        %1092 = vmatmul.mubr.f32.gmra.mxu0 %v902
        %v1093 = vpop.f32.mrf.mxu0
        %v1094 = vadd.f32 0.0, %v1093
        %v1095 = vpop.f32.mrf.mxu0
        %1096 = vdwg.mxu0
        %v1097 = vadd.f32 %v904, %v1019
        %v1098 = vadd.f32 %v905, %v1024
        %v1099 = vadd.f32 %v906, %v1029
        %v1100 = vadd.f32 %v907, %v1034
        %v1101 = vadd.f32 %v908, %v1039
        %v1102 = vadd.f32 %v909, %v1044
        %v1103 = vadd.f32 %v910, %v1049
        %v1104 = vadd.f32 %v911, %v1054
        %v1105 = vadd.f32 %v912, %v1059
        %v1106 = vadd.f32 %v913, %v1064
        %v1107 = vadd.f32 %v914, %v1069
        %v1108 = vadd.f32 %v915, %v1074
        %v1109 = vadd.f32 %v916, %v1079
        %v1110 = vadd.f32 %v917, %v1084
        %v1111 = vadd.f32 %v918, %v1089
        %v1112 = vadd.f32 %v919, %v1094
        %1113 = vst [vmem:[#allocation2] sm:$0xff] %v1097
        %1114 = vst [vmem:[#allocation2 + $0x8] sm:$0xff] %v1098
        %1115 = vst [vmem:[#allocation2 + $0x10] sm:$0xff] %v1099
        %1116 = vst [vmem:[#allocation2 + $0x18] sm:$0xff] %v1100
        %1117 = vst [vmem:[#allocation2 + $0x20] sm:$0xff] %v1101
        %1118 = vst [vmem:[#allocation2 + $0x28] sm:$0xff] %v1102
        %1119 = vst [vmem:[#allocation2 + $0x30] sm:$0xff] %v1103
        %1120 = vst [vmem:[#allocation2 + $0x38] sm:$0xff] %v1104
        %1121 = vst [vmem:[#allocation2 + $0x40] sm:$0xff] %v1105
        %1122 = vst [vmem:[#allocation2 + $0x48] sm:$0xff] %v1106
        %1123 = vst [vmem:[#allocation2 + $0x50] sm:$0xff] %v1107
        %1124 = vst [vmem:[#allocation2 + $0x58] sm:$0xff] %v1108
        %1125 = vst [vmem:[#allocation2 + $0x60] sm:$0xff] %v1109
        %1126 = vst [vmem:[#allocation2 + $0x68] sm:$0xff] %v1110
        %1127 = vst [vmem:[#allocation2 + $0x70] sm:$0xff] %v1111
        %1128 = vst [vmem:[#allocation2 + $0x78] sm:$0xff] %v1112
        %p1129 = scmp.eq.s32.totalorder %s33, 3
        // Predicated region
        $region61: #{tpu_custom_call.1} parent=39 // pred_check
          %p1130 = pneg %p1129
        $region62: #{tpu_custom_call.1} parent=39 // pred_check_branch
          %1132 = sbr.rel (%p1130) target = $region64
        $region63: #{tpu_custom_call.1} parent=39 // pred_region
          %v1133 = vld [vmem:[#allocation2] sm:$0xff]
          %v1134 = vld [vmem:[#allocation2 + $0x8] sm:$0xff]
          %v1135 = vld [vmem:[#allocation2 + $0x10] sm:$0xff]
          %v1136 = vld [vmem:[#allocation2 + $0x18] sm:$0xff]
          %v1137 = vld [vmem:[#allocation2 + $0x20] sm:$0xff]
          %v1138 = vld [vmem:[#allocation2 + $0x28] sm:$0xff]
          %v1139 = vld [vmem:[#allocation2 + $0x30] sm:$0xff]
          %v1140 = vld [vmem:[#allocation2 + $0x38] sm:$0xff]
          %v1141 = vld [vmem:[#allocation2 + $0x40] sm:$0xff]
          %v1142 = vld [vmem:[#allocation2 + $0x48] sm:$0xff]
          %v1143 = vld [vmem:[#allocation2 + $0x50] sm:$0xff]
          %v1144 = vld [vmem:[#allocation2 + $0x58] sm:$0xff]
          %v1145 = vld [vmem:[#allocation2 + $0x60] sm:$0xff]
          %v1146 = vld [vmem:[#allocation2 + $0x68] sm:$0xff]
          %v1147 = vld [vmem:[#allocation2 + $0x70] sm:$0xff]
          %v1148 = vld [vmem:[#allocation2 + $0x78] sm:$0xff]
          %v1149 = vld [vmem:[%s4] sm:$0x1]
          %v1151 = vlaneseq
          %v1152 = vshrl.u32 %v1151, 7
          %v1153 = vsub.s32 0, %v1152
          %v1154 = vrot.slane %v1149, %v1153
          %v1156 = vadd.f32 %v1133, %v1154
          %v1157 = vadd.f32 %v1134, %v1154
          %v1158 = vadd.f32 %v1135, %v1154
          %v1159 = vadd.f32 %v1136, %v1154
          %v1160 = vadd.f32 %v1137, %v1154
          %v1161 = vadd.f32 %v1138, %v1154
          %v1162 = vadd.f32 %v1139, %v1154
          %v1163 = vadd.f32 %v1140, %v1154
          %v1164 = vadd.f32 %v1141, %v1154
          %v1165 = vadd.f32 %v1142, %v1154
          %v1166 = vadd.f32 %v1143, %v1154
          %v1167 = vadd.f32 %v1144, %v1154
          %v1168 = vadd.f32 %v1145, %v1154
          %v1169 = vadd.f32 %v1146, %v1154
          %v1170 = vadd.f32 %v1147, %v1154
          %v1171 = vadd.f32 %v1148, %v1154
          %1172 = vst [vmem:[%s369] sm:$0xff] %v1156
          %1173 = vst [vmem:[%s369 + $0x8] sm:$0xff] %v1157
          %1174 = vst [vmem:[%s369 + $0x10] sm:$0xff] %v1158
          %1175 = vst [vmem:[%s369 + $0x18] sm:$0xff] %v1159
          %1176 = vst [vmem:[%s369 + $0x20] sm:$0xff] %v1160
          %1177 = vst [vmem:[%s369 + $0x28] sm:$0xff] %v1161
          %1178 = vst [vmem:[%s369 + $0x30] sm:$0xff] %v1162
          %1179 = vst [vmem:[%s369 + $0x38] sm:$0xff] %v1163
          %1180 = vst [vmem:[%s369 + $0x40] sm:$0xff] %v1164
          %1181 = vst [vmem:[%s369 + $0x48] sm:$0xff] %v1165
          %1182 = vst [vmem:[%s369 + $0x50] sm:$0xff] %v1166
          %1183 = vst [vmem:[%s369 + $0x58] sm:$0xff] %v1167
          %1184 = vst [vmem:[%s369 + $0x60] sm:$0xff] %v1168
          %1185 = vst [vmem:[%s369 + $0x68] sm:$0xff] %v1169
          %1186 = vst [vmem:[%s369 + $0x70] sm:$0xff] %v1170
          %1187 = vst [vmem:[%s369 + $0x78] sm:$0xff] %v1171
        $region64: #{tpu_custom_call.1} parent=39 // pred_fallthru
          _
        %s1188 = sand.u32 %s173, 1
        %s1189 = scalar_lea.sflag [#allocation5], %s1188
        %s1190 = sand.u32 %s173, 1
        %s1191 = smul.addr %s1190, 128
        %s1192 = scalar_lea.vmem [#allocation11], %s1191
        // Predicated region
        $region65: #{tpu_custom_call.1} parent=39 // pred_check
          %p1193 = pneg %p183
        $region66: #{tpu_custom_call.1} parent=39 // pred_check_branch
          %1195 = sbr.rel (%p1193) target = $region68
        $region67: #{tpu_custom_call.1} parent=39 // pred_region
          %s1196 = smul.u32 16, %s32
          %s1198 = ssub.s32 2048, 2048
          %1199 = vsyncadd %s1189, %s1198
          %s1200 = smul.addr %s1196, 128
          %s1201 = scalar_lea.hbm %s5, %s1200
          %s1202 = sshll.u32 %s1192, 4
          %s1203 = int_to_ptr.vmem [resolvable:$true] %s1202
          %1208 = dma.vmem_to_hbm [thread:$0]  %s1203, 2048, %s1201, %s1189, 128, 128, 8
        $region68: #{tpu_custom_call.1} parent=39 // pred_fallthru
          _
      $region40: #{tpu_custom_call.1} parent=5 // pred_fallthru
        _
      %p1209 = scmp.le.s32.totalorder 2, %s23
      // Predicated region
      $region69: #{tpu_custom_call.1} parent=5 // pred_check
        %p1210 = pneg %p1209
      $region70: #{tpu_custom_call.1} parent=5 // pred_check_branch
        %1212 = sbr.rel (%p1210) target = $region72
      $region71: #{tpu_custom_call.1} parent=5 // pred_region
        %s1213 = ssub.s32 %s23, 2
        // Predicated region
        $region73: #{tpu_custom_call.1} parent=71 // pred_check
          %p1214 = pneg %p189
        $region74: #{tpu_custom_call.1} parent=71 // pred_check_branch
          %1216 = sbr.rel (%p1214) target = $region76
        $region75: #{tpu_custom_call.1} parent=71 // pred_region
          %s1217 = sand.u32 %s174, 1
          %s1218 = scalar_lea.sflag [#allocation5], %s1217
          %s1219 = sand.u32 %s174, 1
          %s1220 = smul.addr %s1219, 128
          %s1221 = scalar_lea.vmem [#allocation11], %s1220
          %1222 = dma.done %s1218, 2048
        $region76: #{tpu_custom_call.1} parent=71 // pred_fallthru
          _
      $region72: #{tpu_custom_call.1} parent=5 // pred_fallthru
        _
    $region6: #{tpu_custom_call.1} parent=1 // loop_footer
      %s27 = sadd.s32 1, %s23
    $region7: #{tpu_custom_call.1} parent=1 // loop_footer_branch
      %22 = sbr.rel target = $region3
    $region8: #{tpu_custom_call.1} parent=1 // loop_exit
      _
    %1223 = vsyncpa [#allocation4], 1
    %s1224 = scalar_lea.sflag [#allocation4], 1
    %1225 = vsyncpa %s1224, 1
    %1226 = vsyncpa [#allocation7], 1
    %s1227 = scalar_lea.sflag [#allocation7], 1
    %1228 = vsyncpa %s1227, 1
    %1229 = vsyncpa [#allocation10], 1
    %s1230 = scalar_lea.sflag [#allocation10], 1
    %1231 = vsyncpa %s1230, 1
    %1232 = vsyncpa [#allocation5], 1
    %s1233 = scalar_lea.sflag [#allocation5], 1
    %1234 = vsyncpa %s1233, 1

</llo_original>
